<compile_context>
chip_gen: v7x
topology: tpu7x:2x2x1
jax: 0.10.0
libtpu: 0.0.40
codegen_flags: <defaults>
</compile_context>

<pallas_src>
import math
import numpy as np

import jax
import jax.numpy as jnp
from jax.experimental import pallas as pl

# ----------------------------- configuration --------------------------------
B = 2            # batch
S = 8            # max_elements (keys / values length)
E = 32           # embedding_dim
M = 4            # num_motifs
H = 4            # num_heads of the motif attention
HD = E // H      # head dim (8)
MH = M * H       # number of block-diagonal query columns (16)
LN_EPS = 1e-5
NEG_INF = -1e9   # additive key-padding bias (torch uses -inf; a fully padded row would give a
                 # uniform distribution here instead of NaN — documented divergence)

E2, E3, E4 = 2 * E, 3 * E, 4 * E
LANES = 128      # slab lane width (one vreg lane row)

# ---- packed parameter slab layout: one (SLAB_ROWS, 128) f32 array, one DMA ----
RW_A = 0              # rows [0,32):  [Wk1|Wv1] cols 0:64 | Wo1 cols 64:96 | Wo2 cols 96:128
RW_B = E              # rows [32,64): [Wk2|Wv2] cols 0:64 | Q_bdT (block-diag queries) cols 64:80
RW_HM = 2 * E         # rows [64,80): head-selector mask (MH, E) at cols 0:32
RW_BKV = 2 * E + MH   # row 80: [bk1|bv1] cols 0:64 | [bk2|bv2] cols 64:128
RW_V1 = RW_BKV + 1    # row 81: bo1 0:32 | gamma1 32:64 | beta1 64:96 | bo2 96:128
RW_V2 = RW_BKV + 2    # row 82: gamma2 0:32 | beta2 32:64 | q2_scaled 64:96
SLAB_ROWS = 88        # padded to a sublane multiple


def _layer_norm(x, gamma, beta):
    mu = jnp.mean(x, axis=-1, keepdims=True)
    var = jnp.mean((x - mu) ** 2, axis=-1, keepdims=True)
    return (x - mu) * jax.lax.rsqrt(var + LN_EPS) * gamma + beta


# ------------------------------ Pallas kernel --------------------------------
def hier_attn_pool_kernel(x_ref, mask_ref, p_ref, out_ref):
    """Refs:
      x_ref    (B*S, E)          element embeddings, rows ordered (b, s)
      mask_ref (B*S, 1) int32    key-padding mask, nonzero = padded element
      p_ref    (SLAB_ROWS, 128)  packed parameters (layout above)
      out_ref  (B, E)
    """
    f32 = jnp.float32
    x = x_ref[...]                                                    # (B*S, E)

    # in-kernel mask -> additive bias (one VPU select)
    mbias = jnp.where(mask_ref[...] != 0, f32(NEG_INF), f32(0.0))     # (B*S, 1)

    # ---- unpack the parameter slab (static slices of one VMEM ref) ----
    wkv1 = p_ref[RW_A:RW_A + E, 0:E2]          # (E, 2E)  [Wk1 | Wv1]
    wo1 = p_ref[RW_A:RW_A + E, E2:E3]          # (E, E)
    wo2 = p_ref[RW_A:RW_A + E, E3:E4]          # (E, E)
    wkv2 = p_ref[RW_B:RW_B + E, 0:E2]          # (E, 2E)  [Wk2 | Wv2]
    qbdT = p_ref[RW_B:RW_B + E, E2:E2 + MH]    # (E, MH)  block-diag, pre-scaled motif queries
    hmask = p_ref[RW_HM:RW_HM + MH, 0:E]       # (MH, E)  1 on the head block matching each query col
    bkv1 = p_ref[RW_BKV:RW_BKV + 1, 0:E2]      # (1, 2E)
    bkv2 = p_ref[RW_BKV:RW_BKV + 1, E2:E4]     # (1, 2E)
    bo1 = p_ref[RW_V1:RW_V1 + 1, 0:E]
    g1 = p_ref[RW_V1:RW_V1 + 1, E:E2]
    be1 = p_ref[RW_V1:RW_V1 + 1, E2:E3]
    bo2 = p_ref[RW_V1:RW_V1 + 1, E3:E4]
    g2 = p_ref[RW_V2:RW_V2 + 1, 0:E]
    be2 = p_ref[RW_V2:RW_V2 + 1, E:E2]
    q2s = p_ref[RW_V2:RW_V2 + 1, E2:E3]        # (1, E) pre-scaled (gq @ Wq2 + bq2) / sqrt(E)

    # ---- stage 1: multi-head motif cross-attention, all heads in one pass ----
    kv1 = jnp.dot(x, wkv1, preferred_element_type=f32) + bkv1         # (B*S, 2E) fused K/V projection
    k1 = kv1[:, 0:E]                                                  # (B*S, E)
    v1 = kv1[:, E:E2].reshape(B, S, E)                                # (B, S, E)

    # one score matmul for every (head, motif) pair via the block-diagonal query matrix
    s1 = jnp.dot(k1, qbdT, preferred_element_type=f32) + mbias        # (B*S, MH), col q = h*M + m
    s1 = s1.reshape(B, S, MH)
    # one softmax over the key axis S for all heads/motifs/batches (exact division)
    s1 = s1 - jnp.max(s1, axis=1, keepdims=True)
    e1 = jnp.exp(s1)
    p1 = e1 / jnp.sum(e1, axis=1, keepdims=True)                      # (B, S, MH)

    # context of every query column against the full value lanes (one batched matmul),
    # then keep the matching head block and fold heads (VPU mask-mul + tile adds).
    p1t = jnp.swapaxes(p1, 1, 2)                                      # (B, MH, S)
    ctx_all = jnp.einsum('bqs,bse->bqe', p1t, v1,
                         preferred_element_type=f32)                  # (B, MH, E)
    ctx_all = ctx_all * hmask[None, :, :]                             # zero cross-head lanes
    ctx = jnp.sum(ctx_all.reshape(B, H, M, E), axis=1)                # (B, M, E): q is h-major, fold h
    ctx = ctx.reshape(B * M, E)                                       # (B*M, E) head-major lanes

    motifs = jnp.dot(ctx, wo1, preferred_element_type=f32) + bo1      # single out-proj dot
    motifs = _layer_norm(motifs, g1, be1)                             # (B*M, E)

    # ---- stage 2: single-head global attention over the motifs ----
    kv2 = jnp.dot(motifs, wkv2, preferred_element_type=f32) + bkv2    # (B*M, 2E) fused K/V projection
    k2 = kv2[:, 0:E].reshape(B, M, E)
    v2 = kv2[:, E:E2].reshape(B, M, E)
    s2 = jnp.sum(k2 * q2s, axis=-1, keepdims=True)                    # (B, M, 1) pre-scaled query
    s2 = s2 - jnp.max(s2, axis=1, keepdims=True)
    e2 = jnp.exp(s2)
    p2 = e2 / jnp.sum(e2, axis=1, keepdims=True)                      # (B, M, 1)
    g = jnp.sum(p2 * v2, axis=1)                                      # (B, E)
    g = jnp.dot(g, wo2, preferred_element_type=f32) + bo2
    out_ref[...] = _layer_norm(g, g2, be2)                            # (B, E)


# ------------------------------- host-side packing ----------------------------
def pack_params(p):
    """Pack the 24 parameter tensors into ONE (SLAB_ROWS, 128) f32 slab.
    Pure one-time layout work (numpy, at init) — review item: hoist out of the call path.
    The query projections are folded in here: q1 = (mq @ Wq1 + bq1)/sqrt(HD) becomes a
    block-diagonal (E, M*H) matrix so stage-1 scores are a single matmul for all heads."""
    pn = {k: np.asarray(v, np.float32) for k, v in p.items()}
    q1s = (pn["mq"] @ pn["wq1"] + pn["bq1"]) / math.sqrt(HD)          # (M, E)
    q2s = (pn["gq"] @ pn["wq2"] + pn["bq2"]) / math.sqrt(E)           # (1, E)

    qbdT = np.zeros((E, MH), np.float32)                              # col q = h*M + m
    hmask = np.zeros((MH, E), np.float32)
    for h in range(H):
        hmask[h * M:(h + 1) * M, h * HD:(h + 1) * HD] = 1.0
        for m in range(M):
            qbdT[h * HD:(h + 1) * HD, h * M + m] = q1s[m, h * HD:(h + 1) * HD]

    slab = np.zeros((SLAB_ROWS, LANES), np.float32)
    slab[RW_A:RW_A + E, 0:E] = pn["wk1"]
    slab[RW_A:RW_A + E, E:E2] = pn["wv1"]
    slab[RW_A:RW_A + E, E2:E3] = pn["wo1"]
    slab[RW_A:RW_A + E, E3:E4] = pn["wo2"]
    slab[RW_B:RW_B + E, 0:E] = pn["wk2"]
    slab[RW_B:RW_B + E, E:E2] = pn["wv2"]
    slab[RW_B:RW_B + E, E2:E2 + MH] = qbdT
    slab[RW_HM:RW_HM + MH, 0:E] = hmask
    slab[RW_BKV, 0:E] = pn["bk1"][0]
    slab[RW_BKV, E:E2] = pn["bv1"][0]
    slab[RW_BKV, E2:E3] = pn["bk2"][0]
    slab[RW_BKV, E3:E4] = pn["bv2"][0]
    slab[RW_V1, 0:E] = pn["bo1"][0]
    slab[RW_V1, E:E2] = pn["g1"][0]
    slab[RW_V1, E2:E3] = pn["be1"][0]
    slab[RW_V1, E3:E4] = pn["bo2"][0]
    slab[RW_V2, 0:E] = pn["g2"][0]
    slab[RW_V2, E:E2] = pn["be2"][0]
    slab[RW_V2, E2:E3] = q2s[0]
    return jnp.asarray(slab)


@jax.jit
def hier_attn_pool(x, mask, slab):
    """x: (B, S, E) f32; mask: (B, S) bool/int (True/nonzero = padding); slab: pack_params(...)."""
    x2d = x.reshape(B * S, E)                        # free, contiguous reshape
    m2d = mask.reshape(B * S, 1).astype(jnp.int32)   # mask->bias conversion itself happens in-kernel
    # No grid: one kernel step; 3 input DMAs (x, mask, param slab) + 1 output DMA.
    return pl.pallas_call(
        hier_attn_pool_kernel,
        out_shape=jax.ShapeDtypeStruct((B, E), jnp.float32),
    )(x2d, m2d, slab)


# ---------------------------- pure-JAX reference -------------------------------
def hier_attn_pool_ref(x, mask, p):
    mb = jnp.where(mask, NEG_INF, 0.0)[:, None, :]                    # (B, 1, S)

    def mha(q, k, v, wq, bq, wk, bk, wv, bv, wo, bo, nheads, bias):
        d = q.shape[-1] // nheads
        Q = q @ wq + bq; K = k @ wk + bk; V = v @ wv + bv
        outs = []
        for h in range(nheads):
            sl = slice(h * d, (h + 1) * d)
            s = jnp.einsum("bme,bse->bms", Q[..., sl], K[..., sl]) / math.sqrt(d)
            if bias is not None:
                s = s + bias
            pr = jax.nn.softmax(s, axis=-1)
            outs.append(jnp.einsum("bms,bse->bme", pr, V[..., sl]))
        return jnp.concatenate(outs, axis=-1) @ wo + bo

    def ln(x, g, b):
        mu = x.mean(-1, keepdims=True)
        var = ((x - mu) ** 2).mean(-1, keepdims=True)
        return (x - mu) / jnp.sqrt(var + LN_EPS) * g + b

    mq = jnp.broadcast_to(p["mq"][None], (B, M, E))
    motifs = mha(mq, x, x, p["wq1"], p["bq1"], p["wk1"], p["bk1"],
                 p["wv1"], p["bv1"], p["wo1"], p["bo1"], H, mb)
    motifs = ln(motifs, p["g1"], p["be1"])
    gq = jnp.broadcast_to(p["gq"][None], (B, 1, E))
    glob = mha(gq, motifs, motifs, p["wq2"], p["bq2"], p["wk2"], p["bk2"],
               p["wv2"], p["bv2"], p["wo2"], p["bo2"], 1, None)
    return ln(glob[:, 0, :], p["g2"][0], p["be2"][0])


# ----------------------------------- main --------------------------------------
if __name__ == "__main__":
    key = jax.random.PRNGKey(0)
    ks = jax.random.split(key, 20)

    def rnd(k, shape, scale=0.1):
        return (scale * jax.random.normal(k, shape)).astype(jnp.float32)

    # Deterministic synthetic parameters (shapes follow the PyTorch module).
    # PyTorch Linear computes x @ W^T + b; all weights here are stored pre-transposed so
    # both the kernel and the reference compute x @ W + b directly.
    params = dict(
        mq=rnd(ks[0], (M, E), 1.0),                    # motif_queries ~ randn
        wq1=rnd(ks[1], (E, E)), wk1=rnd(ks[2], (E, E)), wv1=rnd(ks[3], (E, E)),
        bq1=rnd(ks[4], (1, E)), bk1=rnd(ks[5], (1, E)), bv1=rnd(ks[6], (1, E)),
        wo1=rnd(ks[7], (E, E)), bo1=rnd(ks[8], (1, E)),
        g1=jnp.ones((1, E), jnp.float32), be1=jnp.zeros((1, E), jnp.float32),
        gq=rnd(ks[9], (1, E), 1.0),                    # global_query ~ randn
        wq2=rnd(ks[10], (E, E)), wk2=rnd(ks[11], (E, E)), wv2=rnd(ks[12], (E, E)),
        bq2=rnd(ks[13], (1, E)), bk2=rnd(ks[14], (1, E)), bv2=rnd(ks[15], (1, E)),
        wo2=rnd(ks[16], (E, E)), bo2=rnd(ks[17], (1, E)),
        g2=jnp.ones((1, E), jnp.float32), be2=jnp.zeros((1, E), jnp.float32),
    )

    x = rnd(ks[18], (B, S, E), 1.0)                    # element_embeddings
    # key_padding_mask: True = padding. Batch 0 unpadded, batch 1 has 2 padded slots.
    mask = jnp.array(
        [[False] * S,
         [False] * (S - 2) + [True] * 2], dtype=jnp.bool_)

    slab = pack_params(params)                         # packed ONCE, outside the call path

    out = hier_attn_pool(x, mask, slab)
    out = jax.block_until_ready(out)

    ref = hier_attn_pool_ref(x, mask, params)
    assert out.shape == (B, E)
    assert jnp.allclose(out, ref, atol=2e-4, rtol=2e-4), (
        f"max abs err {jnp.max(jnp.abs(out - ref))}")

    print("KERNEL_OK")
</pallas_src>

<mosaic_0001>
module attributes {stable_mosaic.version = 11 : i64} {
  func.func @hier_attn_pool_kernel(%arg0: memref<16x32xf32, #tpu.memory_space<vmem>>, %arg1: memref<16x1xi32, #tpu.memory_space<vmem>>, %arg2: memref<88x128xf32, #tpu.memory_space<vmem>>, %arg3: memref<2x32xf32, #tpu.memory_space<vmem>>) attributes {dimension_semantics = [], scalar_prefetch = 0 : i64, scratch_operands = 0 : i64, tpu.core_type = #tpu.core_type<tc>} {
    %c0 = arith.constant 0 : index
    %c0_0 = arith.constant 0 : index
    %0 = vector.load %arg0[%c0, %c0_0] : memref<16x32xf32, #tpu.memory_space<vmem>>, vector<16x32xf32>
    %c0_1 = arith.constant 0 : index
    %c0_2 = arith.constant 0 : index
    %1 = vector.load %arg1[%c0_1, %c0_2] : memref<16x1xi32, #tpu.memory_space<vmem>>, vector<16x1xi32>
    %c0_i32 = arith.constant 0 : i32
    %2 = vector.broadcast %c0_i32 : i32 to vector<16x1xi32>
    %3 = arith.cmpi ne, %1, %2 : vector<16x1xi32>
    %cst = arith.constant -1.000000e+09 : f32
    %cst_3 = arith.constant 0.000000e+00 : f32
    %4 = vector.broadcast %cst : f32 to vector<16x1xf32>
    %5 = vector.broadcast %cst_3 : f32 to vector<16x1xf32>
    %6 = arith.select %3, %4, %5 : vector<16x1xi1>, vector<16x1xf32>
    %c0_4 = arith.constant 0 : index
    %c0_5 = arith.constant 0 : index
    %7 = vector.load %arg2[%c0_4, %c0_5] : memref<88x128xf32, #tpu.memory_space<vmem>>, vector<32x64xf32>
    %c0_6 = arith.constant 0 : index
    %c64 = arith.constant 64 : index
    %8 = vector.load %arg2[%c0_6, %c64] : memref<88x128xf32, #tpu.memory_space<vmem>>, vector<32x32xf32>
    %c0_7 = arith.constant 0 : index
    %c96 = arith.constant 96 : index
    %9 = vector.load %arg2[%c0_7, %c96] : memref<88x128xf32, #tpu.memory_space<vmem>>, vector<32x32xf32>
    %c32 = arith.constant 32 : index
    %c0_8 = arith.constant 0 : index
    %10 = vector.load %arg2[%c32, %c0_8] : memref<88x128xf32, #tpu.memory_space<vmem>>, vector<32x64xf32>
    %c32_9 = arith.constant 32 : index
    %c64_10 = arith.constant 64 : index
    %11 = vector.load %arg2[%c32_9, %c64_10] : memref<88x128xf32, #tpu.memory_space<vmem>>, vector<32x16xf32>
    %c64_11 = arith.constant 64 : index
    %c0_12 = arith.constant 0 : index
    %12 = vector.load %arg2[%c64_11, %c0_12] : memref<88x128xf32, #tpu.memory_space<vmem>>, vector<16x32xf32>
    %c80 = arith.constant 80 : index
    %c0_13 = arith.constant 0 : index
    %13 = vector.load %arg2[%c80, %c0_13] : memref<88x128xf32, #tpu.memory_space<vmem>>, vector<1x64xf32>
    %c80_14 = arith.constant 80 : index
    %c64_15 = arith.constant 64 : index
    %14 = vector.load %arg2[%c80_14, %c64_15] : memref<88x128xf32, #tpu.memory_space<vmem>>, vector<1x64xf32>
    %c81 = arith.constant 81 : index
    %c0_16 = arith.constant 0 : index
    %15 = vector.load %arg2[%c81, %c0_16] : memref<88x128xf32, #tpu.memory_space<vmem>>, vector<1x32xf32>
    %c81_17 = arith.constant 81 : index
    %c32_18 = arith.constant 32 : index
    %16 = vector.load %arg2[%c81_17, %c32_18] : memref<88x128xf32, #tpu.memory_space<vmem>>, vector<1x32xf32>
    %c81_19 = arith.constant 81 : index
    %c64_20 = arith.constant 64 : index
    %17 = vector.load %arg2[%c81_19, %c64_20] : memref<88x128xf32, #tpu.memory_space<vmem>>, vector<1x32xf32>
    %c81_21 = arith.constant 81 : index
    %c96_22 = arith.constant 96 : index
    %18 = vector.load %arg2[%c81_21, %c96_22] : memref<88x128xf32, #tpu.memory_space<vmem>>, vector<1x32xf32>
    %c82 = arith.constant 82 : index
    %c0_23 = arith.constant 0 : index
    %19 = vector.load %arg2[%c82, %c0_23] : memref<88x128xf32, #tpu.memory_space<vmem>>, vector<1x32xf32>
    %c82_24 = arith.constant 82 : index
    %c32_25 = arith.constant 32 : index
    %20 = vector.load %arg2[%c82_24, %c32_25] : memref<88x128xf32, #tpu.memory_space<vmem>>, vector<1x32xf32>
    %c82_26 = arith.constant 82 : index
    %c64_27 = arith.constant 64 : index
    %21 = vector.load %arg2[%c82_26, %c64_27] : memref<88x128xf32, #tpu.memory_space<vmem>>, vector<1x32xf32>
    %cst_28 = arith.constant dense<0.000000e+00> : vector<16x64xf32>
    %22 = tpu.matmul %0, %7, %cst_28 {dimension_numbers = #tpu.dot_dimension_numbers<[1], [0], [0], [1], [0, 0, 1, 1], [], []>} : vector<16x32xf32>, vector<32x64xf32>, vector<16x64xf32> -> vector<16x64xf32>
    %23 = vector.broadcast %13 : vector<1x64xf32> to vector<16x64xf32>
    %24 = arith.addf %22, %23 : vector<16x64xf32>
    %25 = vector.extract_strided_slice %24 {offsets = [0, 0], sizes = [16, 32], strides = [1, 1]} : vector<16x64xf32> to vector<16x32xf32>
    %26 = vector.extract_strided_slice %24 {offsets = [0, 32], sizes = [16, 32], strides = [1, 1]} : vector<16x64xf32> to vector<16x32xf32>
    %27 = vector.shape_cast %26 : vector<16x32xf32> to vector<2x8x32xf32>
    %cst_29 = arith.constant dense<0.000000e+00> : vector<16x16xf32>
    %28 = tpu.matmul %25, %11, %cst_29 {dimension_numbers = #tpu.dot_dimension_numbers<[1], [0], [0], [1], [0, 0, 1, 1], [], []>} : vector<16x32xf32>, vector<32x16xf32>, vector<16x16xf32> -> vector<16x16xf32>
    %29 = vector.broadcast %6 : vector<16x1xf32> to vector<16x16xf32>
    %30 = arith.addf %28, %29 : vector<16x16xf32>
    %31 = vector.shape_cast %30 : vector<16x16xf32> to vector<2x8x16xf32>
    %cst_30 = arith.constant dense<0xFF800000> : vector<2x16xf32>
    %32 = vector.multi_reduction <maximumf>, %31, %cst_30 [1] : vector<2x8x16xf32> to vector<2x16xf32>
    %33 = vector.shape_cast %32 : vector<2x16xf32> to vector<2x1x16xf32>
    %34 = vector.broadcast %33 : vector<2x1x16xf32> to vector<2x8x16xf32>
    %35 = arith.subf %31, %34 : vector<2x8x16xf32>
    %36 = math.exp %35 : vector<2x8x16xf32>
    %cst_31 = arith.constant dense<0.000000e+00> : vector<2x16xf32>
    %37 = vector.multi_reduction <add>, %36, %cst_31 [1] : vector<2x8x16xf32> to vector<2x16xf32>
    %38 = vector.shape_cast %37 : vector<2x16xf32> to vector<2x1x16xf32>
    %39 = vector.broadcast %38 : vector<2x1x16xf32> to vector<2x8x16xf32>
    %40 = arith.divf %36, %39 : vector<2x8x16xf32>
    %41 = tpu.transpose %40, [0, 2, 1] : vector<2x8x16xf32> -> vector<2x16x8xf32>
    "tpu.trace_start"() <{level = 10 : i32, message = "bqs,bse->bqe"}> : () -> ()
    %cst_32 = arith.constant dense<0.000000e+00> : vector<2x16x32xf32>
    %42 = tpu.matmul %41, %27, %cst_32 {dimension_numbers = #tpu.dot_dimension_numbers<[2], [1], [1], [2], [0, 0, 0, 1, 1, 2], [0], [0]>} : vector<2x16x8xf32>, vector<2x8x32xf32>, vector<2x16x32xf32> -> vector<2x16x32xf32>
    "tpu.trace_stop"() : () -> ()
    %43 = vector.shape_cast %12 : vector<16x32xf32> to vector<1x16x32xf32>
    %44 = vector.broadcast %43 : vector<1x16x32xf32> to vector<2x16x32xf32>
    %45 = arith.mulf %42, %44 : vector<2x16x32xf32>
    %46 = vector.shape_cast %45 : vector<2x16x32xf32> to vector<2x4x4x32xf32>
    %cst_33 = arith.constant dense<0.000000e+00> : vector<2x4x32xf32>
    %47 = vector.multi_reduction <add>, %46, %cst_33 [1] : vector<2x4x4x32xf32> to vector<2x4x32xf32>
    %48 = vector.shape_cast %47 : vector<2x4x32xf32> to vector<8x32xf32>
    %cst_34 = arith.constant dense<0.000000e+00> : vector<8x32xf32>
    %49 = tpu.matmul %48, %8, %cst_34 {dimension_numbers = #tpu.dot_dimension_numbers<[1], [0], [0], [1], [0, 0, 1, 1], [], []>} : vector<8x32xf32>, vector<32x32xf32>, vector<8x32xf32> -> vector<8x32xf32>
    %50 = vector.broadcast %15 : vector<1x32xf32> to vector<8x32xf32>
    %51 = arith.addf %49, %50 : vector<8x32xf32>
    %cst_35 = arith.constant dense<0.000000e+00> : vector<8xf32>
    %52 = vector.multi_reduction <add>, %51, %cst_35 [1] : vector<8x32xf32> to vector<8xf32>
    %53 = vector.shape_cast %52 : vector<8xf32> to vector<8x1xf32>
    %cst_36 = arith.constant 3.200000e+01 : f32
    %54 = vector.broadcast %cst_36 : f32 to vector<8x1xf32>
    %55 = arith.divf %53, %54 : vector<8x1xf32>
    %56 = vector.broadcast %55 : vector<8x1xf32> to vector<8x32xf32>
    %57 = arith.subf %51, %56 : vector<8x32xf32>
    %58 = arith.mulf %57, %57 : vector<8x32xf32>
    %cst_37 = arith.constant dense<0.000000e+00> : vector<8xf32>
    %59 = vector.multi_reduction <add>, %58, %cst_37 [1] : vector<8x32xf32> to vector<8xf32>
    %60 = vector.shape_cast %59 : vector<8xf32> to vector<8x1xf32>
    %cst_38 = arith.constant 3.200000e+01 : f32
    %61 = vector.broadcast %cst_38 : f32 to vector<8x1xf32>
    %62 = arith.divf %60, %61 : vector<8x1xf32>
    %63 = vector.broadcast %55 : vector<8x1xf32> to vector<8x32xf32>
    %64 = arith.subf %51, %63 : vector<8x32xf32>
    %cst_39 = arith.constant 9.99999974E-6 : f32
    %65 = vector.broadcast %cst_39 : f32 to vector<8x1xf32>
    %66 = arith.addf %62, %65 : vector<8x1xf32>
    %67 = math.rsqrt %66 : vector<8x1xf32>
    %68 = vector.broadcast %67 : vector<8x1xf32> to vector<8x32xf32>
    %69 = arith.mulf %64, %68 : vector<8x32xf32>
    %70 = vector.broadcast %16 : vector<1x32xf32> to vector<8x32xf32>
    %71 = arith.mulf %69, %70 : vector<8x32xf32>
    %72 = vector.broadcast %17 : vector<1x32xf32> to vector<8x32xf32>
    %73 = arith.addf %71, %72 : vector<8x32xf32>
    %cst_40 = arith.constant dense<0.000000e+00> : vector<8x64xf32>
    %74 = tpu.matmul %73, %10, %cst_40 {dimension_numbers = #tpu.dot_dimension_numbers<[1], [0], [0], [1], [0, 0, 1, 1], [], []>} : vector<8x32xf32>, vector<32x64xf32>, vector<8x64xf32> -> vector<8x64xf32>
    %75 = vector.broadcast %14 : vector<1x64xf32> to vector<8x64xf32>
    %76 = arith.addf %74, %75 : vector<8x64xf32>
    %77 = vector.extract_strided_slice %76 {offsets = [0, 0], sizes = [8, 32], strides = [1, 1]} : vector<8x64xf32> to vector<8x32xf32>
    %78 = vector.shape_cast %77 : vector<8x32xf32> to vector<2x4x32xf32>
    %79 = vector.extract_strided_slice %76 {offsets = [0, 32], sizes = [8, 32], strides = [1, 1]} : vector<8x64xf32> to vector<8x32xf32>
    %80 = vector.shape_cast %79 : vector<8x32xf32> to vector<2x4x32xf32>
    %81 = vector.shape_cast %21 : vector<1x32xf32> to vector<1x1x32xf32>
    %82 = vector.broadcast %81 : vector<1x1x32xf32> to vector<2x4x32xf32>
    %83 = arith.mulf %78, %82 : vector<2x4x32xf32>
    %cst_41 = arith.constant dense<0.000000e+00> : vector<2x4xf32>
    %84 = vector.multi_reduction <add>, %83, %cst_41 [2] : vector<2x4x32xf32> to vector<2x4xf32>
    %85 = vector.shape_cast %84 : vector<2x4xf32> to vector<2x4x1xf32>
    %cst_42 = arith.constant dense<0xFF800000> : vector<2x1xf32>
    %86 = vector.multi_reduction <maximumf>, %85, %cst_42 [1] : vector<2x4x1xf32> to vector<2x1xf32>
    %87 = vector.shape_cast %86 : vector<2x1xf32> to vector<2x1x1xf32>
    %88 = vector.broadcast %87 : vector<2x1x1xf32> to vector<2x4x1xf32>
    %89 = arith.subf %85, %88 : vector<2x4x1xf32>
    %90 = math.exp %89 : vector<2x4x1xf32>
    %cst_43 = arith.constant dense<0.000000e+00> : vector<2x1xf32>
    %91 = vector.multi_reduction <add>, %90, %cst_43 [1] : vector<2x4x1xf32> to vector<2x1xf32>
    %92 = vector.shape_cast %91 : vector<2x1xf32> to vector<2x1x1xf32>
    %93 = vector.broadcast %92 : vector<2x1x1xf32> to vector<2x4x1xf32>
    %94 = arith.divf %90, %93 : vector<2x4x1xf32>
    %95 = vector.broadcast %94 : vector<2x4x1xf32> to vector<2x4x32xf32>
    %96 = arith.mulf %95, %80 : vector<2x4x32xf32>
    %cst_44 = arith.constant dense<0.000000e+00> : vector<2x32xf32>
    %97 = vector.multi_reduction <add>, %96, %cst_44 [1] : vector<2x4x32xf32> to vector<2x32xf32>
    %cst_45 = arith.constant dense<0.000000e+00> : vector<2x32xf32>
    %98 = tpu.matmul %97, %9, %cst_45 {dimension_numbers = #tpu.dot_dimension_numbers<[1], [0], [0], [1], [0, 0, 1, 1], [], []>} : vector<2x32xf32>, vector<32x32xf32>, vector<2x32xf32> -> vector<2x32xf32>
    %99 = vector.broadcast %18 : vector<1x32xf32> to vector<2x32xf32>
    %100 = arith.addf %98, %99 : vector<2x32xf32>
    %cst_46 = arith.constant dense<0.000000e+00> : vector<2xf32>
    %101 = vector.multi_reduction <add>, %100, %cst_46 [1] : vector<2x32xf32> to vector<2xf32>
    %102 = vector.shape_cast %101 : vector<2xf32> to vector<2x1xf32>
    %cst_47 = arith.constant 3.200000e+01 : f32
    %103 = vector.broadcast %cst_47 : f32 to vector<2x1xf32>
    %104 = arith.divf %102, %103 : vector<2x1xf32>
    %105 = vector.broadcast %104 : vector<2x1xf32> to vector<2x32xf32>
    %106 = arith.subf %100, %105 : vector<2x32xf32>
    %107 = arith.mulf %106, %106 : vector<2x32xf32>
    %cst_48 = arith.constant dense<0.000000e+00> : vector<2xf32>
    %108 = vector.multi_reduction <add>, %107, %cst_48 [1] : vector<2x32xf32> to vector<2xf32>
    %109 = vector.shape_cast %108 : vector<2xf32> to vector<2x1xf32>
    %cst_49 = arith.constant 3.200000e+01 : f32
    %110 = vector.broadcast %cst_49 : f32 to vector<2x1xf32>
    %111 = arith.divf %109, %110 : vector<2x1xf32>
    %112 = vector.broadcast %104 : vector<2x1xf32> to vector<2x32xf32>
    %113 = arith.subf %100, %112 : vector<2x32xf32>
    %cst_50 = arith.constant 9.99999974E-6 : f32
    %114 = vector.broadcast %cst_50 : f32 to vector<2x1xf32>
    %115 = arith.addf %111, %114 : vector<2x1xf32>
    %116 = math.rsqrt %115 : vector<2x1xf32>
    %117 = vector.broadcast %116 : vector<2x1xf32> to vector<2x32xf32>
    %118 = arith.mulf %113, %117 : vector<2x32xf32>
    %119 = vector.broadcast %19 : vector<1x32xf32> to vector<2x32xf32>
    %120 = arith.mulf %118, %119 : vector<2x32xf32>
    %121 = vector.broadcast %20 : vector<1x32xf32> to vector<2x32xf32>
    %122 = arith.addf %120, %121 : vector<2x32xf32>
    %c0_51 = arith.constant 0 : index
    %c0_52 = arith.constant 0 : index
    %123 = vector.load %arg3[%c0_51, %c0_52] : memref<2x32xf32, #tpu.memory_space<vmem>>, vector<2x32xf32>
    tpu.vector_store %arg3[%c0_51, %c0_52], %122 {strides = array<i32>} : memref<2x32xf32, #tpu.memory_space<vmem>>, vector<2x32xf32>,
    return
  }
}

</mosaic_0001>

<llo_original>
// kernel: hier_attn_pool.1
$region0: #{hier_attn_pool.1}
  #allocation0 [shape = 'u32[]', space=smem, size = 0x4, offset = 0x4, fixed_abs, tag = 'smem constant byte address 0x4 - core index']
  #allocation1 [shape = 'u32[144,128]{1,0:T(1,128)}', space=vmem, size = 0x12000, scoped, tag = 'internal scratch']
  %s0 = inlined_call_operand.vmem [shape: f32[16,32], index: 0, kind: input, shape index: {}]
  %s1 = inlined_call_operand.vmem [shape: s32[16,1], index: 1, kind: input, shape index: {}]
  %s2 = inlined_call_operand.hbm [shape: f32[88,128], index: 2, kind: input, shape index: {}]
  %s3 = inlined_call_operand.hbm [shape: f32[2,32], index: 3, kind: output, shape index: {}]
  %s4 = sld [smem:[#allocation0]]
  $region26: #{hier_attn_pool.1} parent=0
    _
  %s6 = ssub.s32 1, %s4
  %s7 = scalar_select 0, %s6, %s4
  $region1: #{hier_attn_pool.1} parent=0
    #allocation2 [shape = 'u8[45056]{0}', space=vmem, size = 0xb000, scoped, tag = 'input window, operand 2, single buffered']
    #allocation3 [shape = 's32[1]{0}', space=sflag, size = 0x4, scoped, tag = 'scoped memory for hier_attn_pool.1']
    #allocation4 [shape = 's32[1]{0}', space=sflag, size = 0x4, scoped, tag = 'scoped memory for hier_attn_pool.1']
    #allocation5 [shape = 'u8[1024]{0}', space=vmem, size = 0x400, scoped, tag = 'output window, operand 0, single buffered']
    %8 = vsyncpa [#allocation3], 0
    %9 = vsyncpa [#allocation4], 0
    // Predicated region
    $region2: #{hier_attn_pool.1} parent=1 // pred_check
      _
    $region3: #{hier_attn_pool.1} parent=1 // pred_check_branch
      %11 = sbr.rel (0) target = $region5
    $region4: #{hier_attn_pool.1} parent=1 // pred_region
      _
    $region5: #{hier_attn_pool.1} parent=1 // pred_fallthru
      _
    // Predicated region
    $region6: #{hier_attn_pool.1} parent=1 // pred_check
      _
    $region7: #{hier_attn_pool.1} parent=1 // pred_check_branch
      %13 = sbr.rel (0) target = $region9
    $region8: #{hier_attn_pool.1} parent=1 // pred_region
      _
    $region9: #{hier_attn_pool.1} parent=1 // pred_fallthru
      _
    // Predicated region
    $region10: #{hier_attn_pool.1} parent=1 // pred_check
      _
    $region11: #{hier_attn_pool.1} parent=1 // pred_check_branch
      %15 = sbr.rel (0) target = $region13
    $region12: #{hier_attn_pool.1} parent=1 // pred_region
      %s17 = ssub.s32 1408, 1408
      %18 = vsyncadd [#allocation3], %s17
      %s19 = sshll.u32 [#allocation2], 4
      %s20 = int_to_ptr.vmem [resolvable:$true] %s19
      %25 = dma.hbm_to_vmem [thread:$0]  %s2, 1408, %s20, [#allocation3], 128, 128, 8
    $region13: #{hier_attn_pool.1} parent=1 // pred_fallthru
      _
    // Predicated region
    $region14: #{hier_attn_pool.1} parent=1 // pred_check
      _
    $region15: #{hier_attn_pool.1} parent=1 // pred_check_branch
      %27 = sbr.rel (0) target = $region17
    $region16: #{hier_attn_pool.1} parent=1 // pred_region
      %28 = dma.done [#allocation3], 1408
    $region17: #{hier_attn_pool.1} parent=1 // pred_fallthru
      _
    %v29 = vld [vmem:[%s0] sm:$0xff]
    %v30 = vld [vmem:[%s0 + $0x8] sm:$0xff]
    %v31 = vld [vmem:[%s1] sm:$0xff]
    %v32 = vld [vmem:[%s1 + $0x8] sm:$0xff]
    %vm33 = vcmp.ne.s32.totalorder %v31, 0
    %vm34 = vcmp.ne.s32.totalorder %v32, 0
    %v35 = vsel %vm33, -1e+09, 0.0
    %v36 = vsel %vm34, -1e+09, 0.0
    %v37 = vld [vmem:[#allocation2] sm:$0xff]
    %v38 = vld [vmem:[#allocation2 + $0x8] sm:$0xff]
    %v39 = vld [vmem:[#allocation2 + $0x10] sm:$0xff]
    %v40 = vld [vmem:[#allocation2 + $0x18] sm:$0xff]
    %v41 = vld [vmem:[#allocation2 + $0x20] sm:$0xff]
    %v42 = vld [vmem:[#allocation2 + $0x28] sm:$0xff]
    %v43 = vld [vmem:[#allocation2 + $0x30] sm:$0xff]
    %v44 = vld [vmem:[#allocation2 + $0x38] sm:$0xff]
    %v45 = vld [vmem:[#allocation2 + $0x40] sm:$0xff]
    %v46 = vld [vmem:[#allocation2 + $0x48] sm:$0xff]
    %v47 = vld [vmem:[#allocation2 + $0x50] sm:$0x1]
    %v48 = vld [vmem:[#allocation2 + $0x51] sm:$0x1]
    %v49 = vld [vmem:[#allocation2 + $0x52] sm:$0x1]
    %v50 = vlaneseq
    %v51 = vshrl.u32 %v50, 7
    %v52 = vsub.s32 0, %v51
    %v53 = vrot.slane %v47, %v52
    %vm54 = vcmask 261120
    %v56 = vsel %vm54, %v29, 0
    %v59 = vsel %vm54, %v30, 0
    %61 = vmatprep.subr.mxu0 0.0
    %62 = vmatpush1.msra.mxu0 %v37
    %63 = vmatprep.subr.mxu0 0.0
    %64 = vmatpush1.msra.mxu0 %v38
    %65 = vmatprep.subr.mxu0 0.0
    %66 = vmatpush1.msra.mxu0 %v39
    %67 = vmatprep.subr.mxu0 0.0
    %68 = vmatpush1.msra.mxu0 %v40
    %69 = vmatprep.subr.mxu0 0.0
    %70 = vmatpush1.msra.mxu0 0.0
    %71 = vmatprep.subr.mxu0 0.0
    %72 = vmatpush1.msra.mxu0 0.0
    %73 = vmatprep.subr.mxu0 0.0
    %74 = vmatpush1.msra.mxu0 0.0
    %75 = vmatprep.subr.mxu0 0.0
    %76 = vmatpush1.msra.mxu0 0.0
    %77 = vmatprep.subr.mxu0 0.0
    %78 = vmatpush1.msra.mxu0 0.0
    %79 = vmatprep.subr.mxu0 0.0
    %80 = vmatpush1.msra.mxu0 0.0
    %81 = vmatprep.subr.mxu0 0.0
    %82 = vmatpush1.msra.mxu0 0.0
    %83 = vmatprep.subr.mxu0 0.0
    %84 = vmatpush1.msra.mxu0 0.0
    %85 = vmatprep.subr.mxu0 0.0
    %86 = vmatpush1.msra.mxu0 0.0
    %87 = vmatprep.subr.mxu0 0.0
    %88 = vmatpush1.msra.mxu0 0.0
    %89 = vmatprep.subr.mxu0 0.0
    %90 = vmatpush1.msra.mxu0 0.0
    %91 = vmatprep.subr.mxu0 0.0
    %92 = vmatpush1.msra.mxu0 0.0
    %93 = vmatprep.subr.mxu0 0.0
    %94 = vmatpush1.msra.mxu0 0.0
    %95 = vmatprep.subr.mxu0 0.0
    %96 = vmatpush1.msra.mxu0 0.0
    %97 = vmatprep.subr.mxu0 0.0
    %98 = vmatpush1.msra.mxu0 0.0
    %99 = vmatprep.subr.mxu0 0.0
    %100 = vmatpush1.msra.mxu0 0.0
    %101 = vmatprep.subr.mxu0 0.0
    %102 = vmatpush1.msra.mxu0 0.0
    %103 = vmatprep.subr.mxu0 0.0
    %104 = vmatpush1.msra.mxu0 0.0
    %105 = vmatprep.subr.mxu0 0.0
    %106 = vmatpush1.msra.mxu0 0.0
    %107 = vmatprep.subr.mxu0 0.0
    %108 = vmatpush1.msra.mxu0 0.0
    %109 = vmatprep.subr.mxu0 0.0
    %110 = vmatpush1.msra.mxu0 0.0
    %111 = vmatprep.subr.mxu0 0.0
    %112 = vmatpush1.msra.mxu0 0.0
    %113 = vmatprep.subr.mxu0 0.0
    %114 = vmatpush1.msra.mxu0 0.0
    %115 = vmatprep.subr.mxu0 0.0
    %116 = vmatpush1.msra.mxu0 0.0
    %117 = vmatprep.subr.mxu0 0.0
    %118 = vmatpush1.msra.mxu0 0.0
    %119 = vmatprep.subr.mxu0 0.0
    %120 = vmatpush1.msra.mxu0 0.0
    %121 = vmatprep.subr.mxu0 0.0
    %122 = vmatpush1.msra.mxu0 0.0
    %123 = vmatprep.subr.mxu0 0.0
    %124 = vmatpush1.msra.mxu0 0.0
    %125 = vmatprep.mubr.f32.mxu0 0.0
    %126 = vmatmul.mubr.f32.gmra.mrb[0].mxu0 %v56
    %v127 = vpop.f32.mrb[0].mxu0
    %v128 = vadd.f32 %v53, %v127
    %v129 = vpop.f32.mrb[0].mxu0
    %130 = vmatprep.mubr.f32.mxu0 0.0
    %131 = vmatmul.mubr.f32.gmra.mrb[0].mxu0 %v59
    %v132 = vpop.f32.mrb[0].mxu0
    %v133 = vadd.f32 %v53, %v132
    %v134 = vpop.f32.mrb[0].mxu0
    %135 = vdwg.mxu0
    %137 = vset.pattern.permute.xlu0 0
    %138 = vperm.xlu0 %137, %v35
    %v139 = vpop.permute.xlu0 %138
    %142 = vset.pattern.permute.xlu0 0
    %143 = vperm.xlu0 %142, %v36
    %v144 = vpop.permute.xlu0 %143
    %150 = vrot.lane.b32.xlu0 %v41, 64
    %v151 = vpop.permute.xlu0 %150
    %152 = vrot.lane.b32.xlu0 %v42, 64
    %v153 = vpop.permute.xlu0 %152
    %154 = vrot.lane.b32.xlu0 %v43, 64
    %v155 = vpop.permute.xlu0 %154
    %156 = vrot.lane.b32.xlu0 %v44, 64
    %v157 = vpop.permute.xlu0 %156
    %v163 = vsel %vm54, %v128, 0
    %v166 = vsel %vm54, %v133, 0
    %168 = vmatprep.subr.mxu0 0.0
    %169 = vmatpush1.msra.mxu0 %v151
    %170 = vmatprep.subr.mxu0 0.0
    %171 = vmatpush1.msra.mxu0 %v153
    %172 = vmatprep.subr.mxu0 0.0
    %173 = vmatpush1.msra.mxu0 %v155
    %174 = vmatprep.subr.mxu0 0.0
    %175 = vmatpush1.msra.mxu0 %v157
    %176 = vmatprep.subr.mxu0 0.0
    %177 = vmatpush1.msra.mxu0 0.0
    %178 = vmatprep.subr.mxu0 0.0
    %179 = vmatpush1.msra.mxu0 0.0
    %180 = vmatprep.subr.mxu0 0.0
    %181 = vmatpush1.msra.mxu0 0.0
    %182 = vmatprep.subr.mxu0 0.0
    %183 = vmatpush1.msra.mxu0 0.0
    %184 = vmatprep.subr.mxu0 0.0
    %185 = vmatpush1.msra.mxu0 0.0
    %186 = vmatprep.subr.mxu0 0.0
    %187 = vmatpush1.msra.mxu0 0.0
    %188 = vmatprep.subr.mxu0 0.0
    %189 = vmatpush1.msra.mxu0 0.0
    %190 = vmatprep.subr.mxu0 0.0
    %191 = vmatpush1.msra.mxu0 0.0
    %192 = vmatprep.subr.mxu0 0.0
    %193 = vmatpush1.msra.mxu0 0.0
    %194 = vmatprep.subr.mxu0 0.0
    %195 = vmatpush1.msra.mxu0 0.0
    %196 = vmatprep.subr.mxu0 0.0
    %197 = vmatpush1.msra.mxu0 0.0
    %198 = vmatprep.subr.mxu0 0.0
    %199 = vmatpush1.msra.mxu0 0.0
    %200 = vmatprep.subr.mxu0 0.0
    %201 = vmatpush1.msra.mxu0 0.0
    %202 = vmatprep.subr.mxu0 0.0
    %203 = vmatpush1.msra.mxu0 0.0
    %204 = vmatprep.subr.mxu0 0.0
    %205 = vmatpush1.msra.mxu0 0.0
    %206 = vmatprep.subr.mxu0 0.0
    %207 = vmatpush1.msra.mxu0 0.0
    %208 = vmatprep.subr.mxu0 0.0
    %209 = vmatpush1.msra.mxu0 0.0
    %210 = vmatprep.subr.mxu0 0.0
    %211 = vmatpush1.msra.mxu0 0.0
    %212 = vmatprep.subr.mxu0 0.0
    %213 = vmatpush1.msra.mxu0 0.0
    %214 = vmatprep.subr.mxu0 0.0
    %215 = vmatpush1.msra.mxu0 0.0
    %216 = vmatprep.subr.mxu0 0.0
    %217 = vmatpush1.msra.mxu0 0.0
    %218 = vmatprep.subr.mxu0 0.0
    %219 = vmatpush1.msra.mxu0 0.0
    %220 = vmatprep.subr.mxu0 0.0
    %221 = vmatpush1.msra.mxu0 0.0
    %222 = vmatprep.subr.mxu0 0.0
    %223 = vmatpush1.msra.mxu0 0.0
    %224 = vmatprep.subr.mxu0 0.0
    %225 = vmatpush1.msra.mxu0 0.0
    %226 = vmatprep.subr.mxu0 0.0
    %227 = vmatpush1.msra.mxu0 0.0
    %228 = vmatprep.subr.mxu0 0.0
    %229 = vmatpush1.msra.mxu0 0.0
    %230 = vmatprep.subr.mxu0 0.0
    %231 = vmatpush1.msra.mxu0 0.0
    %232 = vmatprep.mubr.f32.mxu0 0.0
    %233 = vmatmul.mubr.f32.gmra.mrb[0].mxu0 %v163
    %v234 = vpop.f32.mrb[0].mxu0
    %v235 = vadd.f32 %v139, %v234
    %v236 = vpop.f32.mrb[0].mxu0
    %237 = vmatprep.mubr.f32.mxu0 0.0
    %238 = vmatmul.mubr.f32.gmra.mrb[0].mxu0 %v166
    %v239 = vpop.f32.mrb[0].mxu0
    %v240 = vadd.f32 %v144, %v239
    %v241 = vpop.f32.mrb[0].mxu0
    %242 = vdwg.mxu0
    %vm243 = vcmask 130048
    %v244 = vsel %vm243, %v235, -inf
    %v245 = vrot.slane %v244, 4
    %v246 = vmax.f32 %v244, %v245
    %v247 = vrot.slane %v246, 2
    %v248 = vmax.f32 %v246, %v247
    %v249 = vrot.slane %v248, 1
    %v250 = vmax.f32 %v248, %v249
    %v251 = vsel %vm243, %v240, -inf
    %v252 = vrot.slane %v251, 4
    %v253 = vmax.f32 %v251, %v252
    %v254 = vrot.slane %v253, 2
    %v255 = vmax.f32 %v253, %v254
    %v256 = vrot.slane %v255, 1
    %v257 = vmax.f32 %v255, %v256
    %v258 = vsub.f32 %v235, %v250
    %v259 = vsub.f32 %v240, %v257
    %v260 = vmul.f32 %v258, 1.442695
    %v261 = vpow.pop %v260
    %v262 = vmul.f32 %v259, 1.442695
    %v263 = vpow.pop %v262
    %v264 = vsel %vm243, %v261, 0.0
    %v265 = vrot.slane %v264, 4
    %v266 = vadd.f32 %v264, %v265
    %v267 = vrot.slane %v266, 2
    %v268 = vadd.f32 %v266, %v267
    %v269 = vrot.slane %v268, 1
    %v270 = vadd.f32 %v268, %v269
    %v271 = vsel %vm243, %v263, 0.0
    %v272 = vrot.slane %v271, 4
    %v273 = vadd.f32 %v271, %v272
    %v274 = vrot.slane %v273, 2
    %v275 = vadd.f32 %v273, %v274
    %v276 = vrot.slane %v275, 1
    %v277 = vadd.f32 %v275, %v276
    %v278 = vrcp.pop %v270
    %v279 = vmul.f32 %v261, %v278
    %v280 = vrcp.pop %v277
    %v281 = vmul.f32 %v263, %v280
    %282 = vxpose.xlu0.b32.start [1/16] %v279, 128
    %283 = vxpose.xlu0.b32.cont [2/16] 0.0, 128
    %284 = vxpose.xlu0.b32.cont [3/16] 0.0, 128
    %285 = vxpose.xlu0.b32.cont [4/16] 0.0, 128
    %286 = vxpose.xlu0.b32.cont [5/16] 0.0, 128
    %287 = vxpose.xlu0.b32.cont [6/16] 0.0, 128
    %288 = vxpose.xlu0.b32.cont [7/16] 0.0, 128
    %289 = vxpose.xlu0.b32.cont [8/16] 0.0, 128
    %290 = vxpose.xlu0.b32.cont [9/16] 0.0, 128
    %291 = vxpose.xlu0.b32.cont [10/16] 0.0, 128
    %292 = vxpose.xlu0.b32.cont [11/16] 0.0, 128
    %293 = vxpose.xlu0.b32.cont [12/16] 0.0, 128
    %294 = vxpose.xlu0.b32.cont [13/16] 0.0, 128
    %295 = vxpose.xlu0.b32.cont [14/16] 0.0, 128
    %296 = vxpose.xlu0.b32.cont [15/16] 0.0, 128
    %297 = vxpose.xlu0.b32.end [16/16] 0.0, 128
    %v298 = vpop.trf.xlu0
    %v299 = vpop.trf.xlu0
    %v300 = vpop.trf.xlu0
    %v301 = vpop.trf.xlu0
    %v302 = vpop.trf.xlu0
    %v303 = vpop.trf.xlu0
    %v304 = vpop.trf.xlu0
    %v305 = vpop.trf.xlu0
    %v306 = vpop.trf.xlu0
    %v307 = vpop.trf.xlu0
    %v308 = vpop.trf.xlu0
    %v309 = vpop.trf.xlu0
    %v310 = vpop.trf.xlu0
    %v311 = vpop.trf.xlu0
    %v312 = vpop.trf.xlu0
    %v313 = vpop.trf.xlu0
    %314 = vxpose.xlu0.b32.start [1/16] %v281, 128
    %315 = vxpose.xlu0.b32.cont [2/16] 0.0, 128
    %316 = vxpose.xlu0.b32.cont [3/16] 0.0, 128
    %317 = vxpose.xlu0.b32.cont [4/16] 0.0, 128
    %318 = vxpose.xlu0.b32.cont [5/16] 0.0, 128
    %319 = vxpose.xlu0.b32.cont [6/16] 0.0, 128
    %320 = vxpose.xlu0.b32.cont [7/16] 0.0, 128
    %321 = vxpose.xlu0.b32.cont [8/16] 0.0, 128
    %322 = vxpose.xlu0.b32.cont [9/16] 0.0, 128
    %323 = vxpose.xlu0.b32.cont [10/16] 0.0, 128
    %324 = vxpose.xlu0.b32.cont [11/16] 0.0, 128
    %325 = vxpose.xlu0.b32.cont [12/16] 0.0, 128
    %326 = vxpose.xlu0.b32.cont [13/16] 0.0, 128
    %327 = vxpose.xlu0.b32.cont [14/16] 0.0, 128
    %328 = vxpose.xlu0.b32.cont [15/16] 0.0, 128
    %329 = vxpose.xlu0.b32.end [16/16] 0.0, 128
    %v330 = vpop.trf.xlu0
    %v331 = vpop.trf.xlu0
    %v332 = vpop.trf.xlu0
    %v333 = vpop.trf.xlu0
    %v334 = vpop.trf.xlu0
    %v335 = vpop.trf.xlu0
    %v336 = vpop.trf.xlu0
    %v337 = vpop.trf.xlu0
    %v338 = vpop.trf.xlu0
    %v339 = vpop.trf.xlu0
    %v340 = vpop.trf.xlu0
    %v341 = vpop.trf.xlu0
    %v342 = vpop.trf.xlu0
    %v343 = vpop.trf.xlu0
    %v344 = vpop.trf.xlu0
    %v345 = vpop.trf.xlu0
    %346 = vrot.lane.b32.xlu0 %v128, 96
    %v347 = vpop.permute.xlu0 %346
    %vm349 = vcmask 64512
    %v351 = vsel %vm349, %v298, 0
    %v354 = vsel %vm349, %v299, 0
    %356 = vmatprep.subr.mxu0 0.0
    %357 = vmatpush1.msra.mxu0 %v347
    %358 = vmatprep.subr.mxu0 0.0
    %359 = vmatpush1.msra.mxu0 0.0
    %360 = vmatprep.subr.mxu0 0.0
    %361 = vmatpush1.msra.mxu0 0.0
    %362 = vmatprep.subr.mxu0 0.0
    %363 = vmatpush1.msra.mxu0 0.0
    %364 = vmatprep.subr.mxu0 0.0
    %365 = vmatpush1.msra.mxu0 0.0
    %366 = vmatprep.subr.mxu0 0.0
    %367 = vmatpush1.msra.mxu0 0.0
    %368 = vmatprep.subr.mxu0 0.0
    %369 = vmatpush1.msra.mxu0 0.0
    %370 = vmatprep.subr.mxu0 0.0
    %371 = vmatpush1.msra.mxu0 0.0
    %372 = vmatprep.subr.mxu0 0.0
    %373 = vmatpush1.msra.mxu0 0.0
    %374 = vmatprep.subr.mxu0 0.0
    %375 = vmatpush1.msra.mxu0 0.0
    %376 = vmatprep.subr.mxu0 0.0
    %377 = vmatpush1.msra.mxu0 0.0
    %378 = vmatprep.subr.mxu0 0.0
    %379 = vmatpush1.msra.mxu0 0.0
    %380 = vmatprep.subr.mxu0 0.0
    %381 = vmatpush1.msra.mxu0 0.0
    %382 = vmatprep.subr.mxu0 0.0
    %383 = vmatpush1.msra.mxu0 0.0
    %384 = vmatprep.subr.mxu0 0.0
    %385 = vmatpush1.msra.mxu0 0.0
    %386 = vmatprep.subr.mxu0 0.0
    %387 = vmatpush1.msra.mxu0 0.0
    %388 = vmatprep.subr.mxu0 0.0
    %389 = vmatpush1.msra.mxu0 0.0
    %390 = vmatprep.subr.mxu0 0.0
    %391 = vmatpush1.msra.mxu0 0.0
    %392 = vmatprep.subr.mxu0 0.0
    %393 = vmatpush1.msra.mxu0 0.0
    %394 = vmatprep.subr.mxu0 0.0
    %395 = vmatpush1.msra.mxu0 0.0
    %396 = vmatprep.subr.mxu0 0.0
    %397 = vmatpush1.msra.mxu0 0.0
    %398 = vmatprep.subr.mxu0 0.0
    %399 = vmatpush1.msra.mxu0 0.0
    %400 = vmatprep.subr.mxu0 0.0
    %401 = vmatpush1.msra.mxu0 0.0
    %402 = vmatprep.subr.mxu0 0.0
    %403 = vmatpush1.msra.mxu0 0.0
    %404 = vmatprep.subr.mxu0 0.0
    %405 = vmatpush1.msra.mxu0 0.0
    %406 = vmatprep.subr.mxu0 0.0
    %407 = vmatpush1.msra.mxu0 0.0
    %408 = vmatprep.subr.mxu0 0.0
    %409 = vmatpush1.msra.mxu0 0.0
    %410 = vmatprep.subr.mxu0 0.0
    %411 = vmatpush1.msra.mxu0 0.0
    %412 = vmatprep.subr.mxu0 0.0
    %413 = vmatpush1.msra.mxu0 0.0
    %414 = vmatprep.subr.mxu0 0.0
    %415 = vmatpush1.msra.mxu0 0.0
    %416 = vmatprep.subr.mxu0 0.0
    %417 = vmatpush1.msra.mxu0 0.0
    %418 = vmatprep.subr.mxu0 0.0
    %419 = vmatpush1.msra.mxu0 0.0
    %420 = vmatprep.mubr.f32.mxu0 0.0
    %421 = vmatmul.mubr.f32.gmra.mrb[0].mxu0 %v351
    %v422 = vpop.f32.mrb[0].mxu0
    %v423 = vadd.f32 0.0, %v422
    %v424 = vpop.f32.mrb[0].mxu0
    %425 = vmatprep.mubr.f32.mxu0 0.0
    %426 = vmatmul.mubr.f32.gmra.mrb[0].mxu0 %v354
    %v427 = vpop.f32.mrb[0].mxu0
    %v428 = vadd.f32 0.0, %v427
    %v429 = vpop.f32.mrb[0].mxu0
    %430 = vdwg.mxu0
    %431 = vrot.lane.b32.xlu0 %v133, 96
    %v432 = vpop.permute.xlu0 %431
    %v435 = vsel %vm349, %v330, 0
    %v438 = vsel %vm349, %v331, 0
    %440 = vmatprep.subr.mxu0 0.0
    %441 = vmatpush1.msra.mxu0 %v432
    %442 = vmatprep.subr.mxu0 0.0
    %443 = vmatpush1.msra.mxu0 0.0
    %444 = vmatprep.subr.mxu0 0.0
    %445 = vmatpush1.msra.mxu0 0.0
    %446 = vmatprep.subr.mxu0 0.0
    %447 = vmatpush1.msra.mxu0 0.0
    %448 = vmatprep.subr.mxu0 0.0
    %449 = vmatpush1.msra.mxu0 0.0
    %450 = vmatprep.subr.mxu0 0.0
    %451 = vmatpush1.msra.mxu0 0.0
    %452 = vmatprep.subr.mxu0 0.0
    %453 = vmatpush1.msra.mxu0 0.0
    %454 = vmatprep.subr.mxu0 0.0
    %455 = vmatpush1.msra.mxu0 0.0
    %456 = vmatprep.subr.mxu0 0.0
    %457 = vmatpush1.msra.mxu0 0.0
    %458 = vmatprep.subr.mxu0 0.0
    %459 = vmatpush1.msra.mxu0 0.0
    %460 = vmatprep.subr.mxu0 0.0
    %461 = vmatpush1.msra.mxu0 0.0
    %462 = vmatprep.subr.mxu0 0.0
    %463 = vmatpush1.msra.mxu0 0.0
    %464 = vmatprep.subr.mxu0 0.0
    %465 = vmatpush1.msra.mxu0 0.0
    %466 = vmatprep.subr.mxu0 0.0
    %467 = vmatpush1.msra.mxu0 0.0
    %468 = vmatprep.subr.mxu0 0.0
    %469 = vmatpush1.msra.mxu0 0.0
    %470 = vmatprep.subr.mxu0 0.0
    %471 = vmatpush1.msra.mxu0 0.0
    %472 = vmatprep.subr.mxu0 0.0
    %473 = vmatpush1.msra.mxu0 0.0
    %474 = vmatprep.subr.mxu0 0.0
    %475 = vmatpush1.msra.mxu0 0.0
    %476 = vmatprep.subr.mxu0 0.0
    %477 = vmatpush1.msra.mxu0 0.0
    %478 = vmatprep.subr.mxu0 0.0
    %479 = vmatpush1.msra.mxu0 0.0
    %480 = vmatprep.subr.mxu0 0.0
    %481 = vmatpush1.msra.mxu0 0.0
    %482 = vmatprep.subr.mxu0 0.0
    %483 = vmatpush1.msra.mxu0 0.0
    %484 = vmatprep.subr.mxu0 0.0
    %485 = vmatpush1.msra.mxu0 0.0
    %486 = vmatprep.subr.mxu0 0.0
    %487 = vmatpush1.msra.mxu0 0.0
    %488 = vmatprep.subr.mxu0 0.0
    %489 = vmatpush1.msra.mxu0 0.0
    %490 = vmatprep.subr.mxu0 0.0
    %491 = vmatpush1.msra.mxu0 0.0
    %492 = vmatprep.subr.mxu0 0.0
    %493 = vmatpush1.msra.mxu0 0.0
    %494 = vmatprep.subr.mxu0 0.0
    %495 = vmatpush1.msra.mxu0 0.0
    %496 = vmatprep.subr.mxu0 0.0
    %497 = vmatpush1.msra.mxu0 0.0
    %498 = vmatprep.subr.mxu0 0.0
    %499 = vmatpush1.msra.mxu0 0.0
    %500 = vmatprep.subr.mxu0 0.0
    %501 = vmatpush1.msra.mxu0 0.0
    %502 = vmatprep.subr.mxu0 0.0
    %503 = vmatpush1.msra.mxu0 0.0
    %504 = vmatprep.mubr.f32.mxu0 0.0
    %505 = vmatmul.mubr.f32.gmra.mrb[0].mxu0 %v435
    %v506 = vpop.f32.mrb[0].mxu0
    %v507 = vadd.f32 0.0, %v506
    %v508 = vpop.f32.mrb[0].mxu0
    %509 = vmatprep.mubr.f32.mxu0 0.0
    %510 = vmatmul.mubr.f32.gmra.mrb[0].mxu0 %v438
    %v511 = vpop.f32.mrb[0].mxu0
    %v512 = vadd.f32 0.0, %v511
    %v513 = vpop.f32.mrb[0].mxu0
    %514 = vdwg.mxu0
    %v515 = vmul.f32 %v423, %v45
    %v516 = vmul.f32 %v428, %v46
    %v517 = vmul.f32 %v507, %v45
    %v518 = vmul.f32 %v512, %v46
    %v523 = vcombine.high %v515, %v515
    %v524 = vcombine.high %v516, %v516
    %v525 = vcombine.high %v517, %v517
    %v526 = vcombine.high %v518, %v518
    %vm531 = vcmask 257024
    %v532 = vsel %vm531, %v515, 0.0
    %v533 = vsel %vm531, %v523, 0.0
    %v534 = vadd.f32 %v532, %v533
    %v535 = vsel %vm531, %v516, 0.0
    %v536 = vadd.f32 %v534, %v535
    %v537 = vsel %vm531, %v524, 0.0
    %v538 = vadd.f32 %v536, %v537
    %v539 = vsel %vm531, %v517, 0.0
    %v540 = vsel %vm531, %v525, 0.0
    %v541 = vadd.f32 %v539, %v540
    %v542 = vsel %vm531, %v518, 0.0
    %v543 = vadd.f32 %v541, %v542
    %v544 = vsel %vm531, %v526, 0.0
    %v545 = vadd.f32 %v543, %v544
    %v546 = vlaneseq
    %v547 = vshrl.u32 %v546, 7
    %v548 = vsub.s32 0, %v547
    %v549 = vrot.slane %v48, %v548
    %v552 = vcombine.low %v538, %v545
    %557 = vrot.lane.b32.xlu0 %v37, 64
    %v558 = vpop.permute.xlu0 %557
    %559 = vrot.lane.b32.xlu0 %v38, 64
    %v560 = vpop.permute.xlu0 %559
    %561 = vrot.lane.b32.xlu0 %v39, 64
    %v562 = vpop.permute.xlu0 %561
    %563 = vrot.lane.b32.xlu0 %v40, 64
    %v564 = vpop.permute.xlu0 %563
    %v569 = vsel %vm54, %v552, 0
    %571 = vmatprep.subr.mxu0 0.0
    %572 = vmatpush1.msra.mxu0 %v558
    %573 = vmatprep.subr.mxu0 0.0
    %574 = vmatpush1.msra.mxu0 %v560
    %575 = vmatprep.subr.mxu0 0.0
    %576 = vmatpush1.msra.mxu0 %v562
    %577 = vmatprep.subr.mxu0 0.0
    %578 = vmatpush1.msra.mxu0 %v564
    %579 = vmatprep.subr.mxu0 0.0
    %580 = vmatpush1.msra.mxu0 0.0
    %581 = vmatprep.subr.mxu0 0.0
    %582 = vmatpush1.msra.mxu0 0.0
    %583 = vmatprep.subr.mxu0 0.0
    %584 = vmatpush1.msra.mxu0 0.0
    %585 = vmatprep.subr.mxu0 0.0
    %586 = vmatpush1.msra.mxu0 0.0
    %587 = vmatprep.subr.mxu0 0.0
    %588 = vmatpush1.msra.mxu0 0.0
    %589 = vmatprep.subr.mxu0 0.0
    %590 = vmatpush1.msra.mxu0 0.0
    %591 = vmatprep.subr.mxu0 0.0
    %592 = vmatpush1.msra.mxu0 0.0
    %593 = vmatprep.subr.mxu0 0.0
    %594 = vmatpush1.msra.mxu0 0.0
    %595 = vmatprep.subr.mxu0 0.0
    %596 = vmatpush1.msra.mxu0 0.0
    %597 = vmatprep.subr.mxu0 0.0
    %598 = vmatpush1.msra.mxu0 0.0
    %599 = vmatprep.subr.mxu0 0.0
    %600 = vmatpush1.msra.mxu0 0.0
    %601 = vmatprep.subr.mxu0 0.0
    %602 = vmatpush1.msra.mxu0 0.0
    %603 = vmatprep.subr.mxu0 0.0
    %604 = vmatpush1.msra.mxu0 0.0
    %605 = vmatprep.subr.mxu0 0.0
    %606 = vmatpush1.msra.mxu0 0.0
    %607 = vmatprep.subr.mxu0 0.0
    %608 = vmatpush1.msra.mxu0 0.0
    %609 = vmatprep.subr.mxu0 0.0
    %610 = vmatpush1.msra.mxu0 0.0
    %611 = vmatprep.subr.mxu0 0.0
    %612 = vmatpush1.msra.mxu0 0.0
    %613 = vmatprep.subr.mxu0 0.0
    %614 = vmatpush1.msra.mxu0 0.0
    %615 = vmatprep.subr.mxu0 0.0
    %616 = vmatpush1.msra.mxu0 0.0
    %617 = vmatprep.subr.mxu0 0.0
    %618 = vmatpush1.msra.mxu0 0.0
    %619 = vmatprep.subr.mxu0 0.0
    %620 = vmatpush1.msra.mxu0 0.0
    %621 = vmatprep.subr.mxu0 0.0
    %622 = vmatpush1.msra.mxu0 0.0
    %623 = vmatprep.subr.mxu0 0.0
    %624 = vmatpush1.msra.mxu0 0.0
    %625 = vmatprep.subr.mxu0 0.0
    %626 = vmatpush1.msra.mxu0 0.0
    %627 = vmatprep.subr.mxu0 0.0
    %628 = vmatpush1.msra.mxu0 0.0
    %629 = vmatprep.subr.mxu0 0.0
    %630 = vmatpush1.msra.mxu0 0.0
    %631 = vmatprep.subr.mxu0 0.0
    %632 = vmatpush1.msra.mxu0 0.0
    %633 = vmatprep.subr.mxu0 0.0
    %634 = vmatpush1.msra.mxu0 0.0
    %635 = vmatprep.mubr.f32.mxu0 0.0
    %636 = vmatmul.mubr.f32.gmra.mrb[0].mxu0 %v569
    %v637 = vpop.f32.mrb[0].mxu0
    %v638 = vadd.f32 %v549, %v637
    %v639 = vpop.f32.mrb[0].mxu0
    %640 = vdwg.mxu0
    %v641 = vsel %vm54, %v638, 0.0
    %642 = vadd.xlane.f32.xlu0 %v641
    %v643 = vpop.xlane.xlu0 %642
    %v644 = vrcp.pop 32.0
    %v645 = vmul.f32 %v643, %v644
    %v646 = vsub.f32 %v638, %v645
    %v647 = vmul.f32 %v646, %v646
    %v648 = vsel %vm54, %v647, 0.0
    %649 = vadd.xlane.f32.xlu0 %v648
    %v650 = vpop.xlane.xlu0 %649
    %v651 = vmul.f32 %v650, %v644
    %v652 = vadd.f32 %v651, 1e-05
    %v653 = vrsqrt.pop %v652
    %v654 = vmul.f32 %v646, %v653
    %656 = vrot.lane.b32.xlu0 %v549, 96
    %v657 = vpop.permute.xlu0 %656
    %v659 = vmul.f32 %v654, %v657
    %660 = vrot.lane.b32.xlu0 %v549, 64
    %v661 = vpop.permute.xlu0 %660
    %v663 = vadd.f32 %v659, %v661
    %665 = vrot.lane.b32.xlu0 %v53, 64
    %v666 = vpop.permute.xlu0 %665
    %v669 = vsel %vm54, %v663, 0
    %671 = vmatprep.subr.mxu0 0.0
    %672 = vmatpush1.msra.mxu0 %v41
    %673 = vmatprep.subr.mxu0 0.0
    %674 = vmatpush1.msra.mxu0 %v42
    %675 = vmatprep.subr.mxu0 0.0
    %676 = vmatpush1.msra.mxu0 %v43
    %677 = vmatprep.subr.mxu0 0.0
    %678 = vmatpush1.msra.mxu0 %v44
    %679 = vmatprep.subr.mxu0 0.0
    %680 = vmatpush1.msra.mxu0 0.0
    %681 = vmatprep.subr.mxu0 0.0
    %682 = vmatpush1.msra.mxu0 0.0
    %683 = vmatprep.subr.mxu0 0.0
    %684 = vmatpush1.msra.mxu0 0.0
    %685 = vmatprep.subr.mxu0 0.0
    %686 = vmatpush1.msra.mxu0 0.0
    %687 = vmatprep.subr.mxu0 0.0
    %688 = vmatpush1.msra.mxu0 0.0
    %689 = vmatprep.subr.mxu0 0.0
    %690 = vmatpush1.msra.mxu0 0.0
    %691 = vmatprep.subr.mxu0 0.0
    %692 = vmatpush1.msra.mxu0 0.0
    %693 = vmatprep.subr.mxu0 0.0
    %694 = vmatpush1.msra.mxu0 0.0
    %695 = vmatprep.subr.mxu0 0.0
    %696 = vmatpush1.msra.mxu0 0.0
    %697 = vmatprep.subr.mxu0 0.0
    %698 = vmatpush1.msra.mxu0 0.0
    %699 = vmatprep.subr.mxu0 0.0
    %700 = vmatpush1.msra.mxu0 0.0
    %701 = vmatprep.subr.mxu0 0.0
    %702 = vmatpush1.msra.mxu0 0.0
    %703 = vmatprep.subr.mxu0 0.0
    %704 = vmatpush1.msra.mxu0 0.0
    %705 = vmatprep.subr.mxu0 0.0
    %706 = vmatpush1.msra.mxu0 0.0
    %707 = vmatprep.subr.mxu0 0.0
    %708 = vmatpush1.msra.mxu0 0.0
    %709 = vmatprep.subr.mxu0 0.0
    %710 = vmatpush1.msra.mxu0 0.0
    %711 = vmatprep.subr.mxu0 0.0
    %712 = vmatpush1.msra.mxu0 0.0
    %713 = vmatprep.subr.mxu0 0.0
    %714 = vmatpush1.msra.mxu0 0.0
    %715 = vmatprep.subr.mxu0 0.0
    %716 = vmatpush1.msra.mxu0 0.0
    %717 = vmatprep.subr.mxu0 0.0
    %718 = vmatpush1.msra.mxu0 0.0
    %719 = vmatprep.subr.mxu0 0.0
    %720 = vmatpush1.msra.mxu0 0.0
    %721 = vmatprep.subr.mxu0 0.0
    %722 = vmatpush1.msra.mxu0 0.0
    %723 = vmatprep.subr.mxu0 0.0
    %724 = vmatpush1.msra.mxu0 0.0
    %725 = vmatprep.subr.mxu0 0.0
    %726 = vmatpush1.msra.mxu0 0.0
    %727 = vmatprep.subr.mxu0 0.0
    %728 = vmatpush1.msra.mxu0 0.0
    %729 = vmatprep.subr.mxu0 0.0
    %730 = vmatpush1.msra.mxu0 0.0
    %731 = vmatprep.subr.mxu0 0.0
    %732 = vmatpush1.msra.mxu0 0.0
    %733 = vmatprep.subr.mxu0 0.0
    %734 = vmatpush1.msra.mxu0 0.0
    %735 = vmatprep.mubr.f32.mxu0 0.0
    %736 = vmatmul.mubr.f32.gmra.mrb[0].mxu0 %v669
    %v737 = vpop.f32.mrb[0].mxu0
    %v738 = vadd.f32 %v666, %v737
    %v739 = vpop.f32.mrb[0].mxu0
    %740 = vdwg.mxu0
    %v742 = vcombine.high %v738, %v738
    %v744 = vlaneseq
    %v745 = vshrl.u32 %v744, 7
    %v746 = vsub.s32 0, %v745
    %v747 = vrot.slane %v49, %v746
    %749 = vrot.lane.b32.xlu0 %v747, 64
    %v750 = vpop.permute.xlu0 %749
    %v752 = vmul.f32 %v738, %v750
    %v753 = vmul.f32 %v742, %v750
    %v754 = vsel %vm531, %v752, 0.0
    %755 = vadd.xlane.f32.xlu0 %v754
    %v756 = vpop.xlane.xlu0 %755
    %v757 = vsel %vm531, %v753, 0.0
    %758 = vadd.xlane.f32.xlu0 %v757
    %v759 = vpop.xlane.xlu0 %758
    %vm760 = vcmask 1043456
    %v761 = vsel %vm760, %v756, -inf
    %v762 = vrot.slane %v761, 4
    %v763 = vmax.f32 %v761, %v762
    %v764 = vrot.slane %v763, 2
    %v765 = vmax.f32 %v763, %v764
    %v766 = vrot.slane %v765, 1
    %v767 = vmax.f32 %v765, %v766
    %v768 = vsel %vm760, %v759, -inf
    %v769 = vrot.slane %v768, 4
    %v770 = vmax.f32 %v768, %v769
    %v771 = vrot.slane %v770, 2
    %v772 = vmax.f32 %v770, %v771
    %v773 = vrot.slane %v772, 1
    %v774 = vmax.f32 %v772, %v773
    %v775 = vsub.f32 %v756, %v767
    %v776 = vsub.f32 %v759, %v774
    %v777 = vmul.f32 %v775, 1.442695
    %v778 = vpow.pop %v777
    %v779 = vmul.f32 %v776, 1.442695
    %v780 = vpow.pop %v779
    %v781 = vsel %vm760, %v778, 0.0
    %v782 = vrot.slane %v781, 4
    %v783 = vadd.f32 %v781, %v782
    %v784 = vrot.slane %v783, 2
    %v785 = vadd.f32 %v783, %v784
    %v786 = vrot.slane %v785, 1
    %v787 = vadd.f32 %v785, %v786
    %v788 = vsel %vm760, %v780, 0.0
    %v789 = vrot.slane %v788, 4
    %v790 = vadd.f32 %v788, %v789
    %v791 = vrot.slane %v790, 2
    %v792 = vadd.f32 %v790, %v791
    %v793 = vrot.slane %v792, 1
    %v794 = vadd.f32 %v792, %v793
    %v795 = vrcp.pop %v787
    %v796 = vmul.f32 %v778, %v795
    %v797 = vrcp.pop %v794
    %v798 = vmul.f32 %v780, %v797
    %799 = vrot.lane.b32.xlu0 %v738, 96
    %v800 = vpop.permute.xlu0 %799
    %801 = vrot.lane.b32.xlu0 %v742, 96
    %v802 = vpop.permute.xlu0 %801
    %v805 = vmul.f32 %v796, %v800
    %v806 = vmul.f32 %v798, %v802
    %v807 = vsel %vm531, %v805, 0.0
    %v808 = vrot.slane %v807, 4
    %v809 = vadd.f32 %v807, %v808
    %v810 = vrot.slane %v809, 2
    %v811 = vadd.f32 %v809, %v810
    %v812 = vrot.slane %v811, 1
    %v813 = vadd.f32 %v811, %v812
    %v814 = vsel %vm531, %v806, 0.0
    %v815 = vrot.slane %v814, 4
    %v816 = vadd.f32 %v814, %v815
    %v817 = vrot.slane %v816, 2
    %v818 = vadd.f32 %v816, %v817
    %v819 = vrot.slane %v818, 1
    %v820 = vadd.f32 %v818, %v819
    %vm823 = vcmask 1041409
    %v824 = vsel %vm823, %v820, %v813
    %825 = vrot.lane.b32.xlu0 %v37, 32
    %v826 = vpop.permute.xlu0 %825
    %827 = vrot.lane.b32.xlu0 %v38, 32
    %v828 = vpop.permute.xlu0 %827
    %829 = vrot.lane.b32.xlu0 %v39, 32
    %v830 = vpop.permute.xlu0 %829
    %831 = vrot.lane.b32.xlu0 %v40, 32
    %v832 = vpop.permute.xlu0 %831
    %837 = vrot.lane.b32.xlu0 %v549, 32
    %v838 = vpop.permute.xlu0 %837
    %v840 = vsel %vm54, %v824, 0
    %842 = vmatprep.subr.mxu0 0.0
    %843 = vmatpush1.msra.mxu0 %v826
    %844 = vmatprep.subr.mxu0 0.0
    %845 = vmatpush1.msra.mxu0 %v828
    %846 = vmatprep.subr.mxu0 0.0
    %847 = vmatpush1.msra.mxu0 %v830
    %848 = vmatprep.subr.mxu0 0.0
    %849 = vmatpush1.msra.mxu0 %v832
    %850 = vmatprep.subr.mxu0 0.0
    %851 = vmatpush1.msra.mxu0 0.0
    %852 = vmatprep.subr.mxu0 0.0
    %853 = vmatpush1.msra.mxu0 0.0
    %854 = vmatprep.subr.mxu0 0.0
    %855 = vmatpush1.msra.mxu0 0.0
    %856 = vmatprep.subr.mxu0 0.0
    %857 = vmatpush1.msra.mxu0 0.0
    %858 = vmatprep.subr.mxu0 0.0
    %859 = vmatpush1.msra.mxu0 0.0
    %860 = vmatprep.subr.mxu0 0.0
    %861 = vmatpush1.msra.mxu0 0.0
    %862 = vmatprep.subr.mxu0 0.0
    %863 = vmatpush1.msra.mxu0 0.0
    %864 = vmatprep.subr.mxu0 0.0
    %865 = vmatpush1.msra.mxu0 0.0
    %866 = vmatprep.subr.mxu0 0.0
    %867 = vmatpush1.msra.mxu0 0.0
    %868 = vmatprep.subr.mxu0 0.0
    %869 = vmatpush1.msra.mxu0 0.0
    %870 = vmatprep.subr.mxu0 0.0
    %871 = vmatpush1.msra.mxu0 0.0
    %872 = vmatprep.subr.mxu0 0.0
    %873 = vmatpush1.msra.mxu0 0.0
    %874 = vmatprep.subr.mxu0 0.0
    %875 = vmatpush1.msra.mxu0 0.0
    %876 = vmatprep.subr.mxu0 0.0
    %877 = vmatpush1.msra.mxu0 0.0
    %878 = vmatprep.subr.mxu0 0.0
    %879 = vmatpush1.msra.mxu0 0.0
    %880 = vmatprep.subr.mxu0 0.0
    %881 = vmatpush1.msra.mxu0 0.0
    %882 = vmatprep.subr.mxu0 0.0
    %883 = vmatpush1.msra.mxu0 0.0
    %884 = vmatprep.subr.mxu0 0.0
    %885 = vmatpush1.msra.mxu0 0.0
    %886 = vmatprep.subr.mxu0 0.0
    %887 = vmatpush1.msra.mxu0 0.0
    %888 = vmatprep.subr.mxu0 0.0
    %889 = vmatpush1.msra.mxu0 0.0
    %890 = vmatprep.subr.mxu0 0.0
    %891 = vmatpush1.msra.mxu0 0.0
    %892 = vmatprep.subr.mxu0 0.0
    %893 = vmatpush1.msra.mxu0 0.0
    %894 = vmatprep.subr.mxu0 0.0
    %895 = vmatpush1.msra.mxu0 0.0
    %896 = vmatprep.subr.mxu0 0.0
    %897 = vmatpush1.msra.mxu0 0.0
    %898 = vmatprep.subr.mxu0 0.0
    %899 = vmatpush1.msra.mxu0 0.0
    %900 = vmatprep.subr.mxu0 0.0
    %901 = vmatpush1.msra.mxu0 0.0
    %902 = vmatprep.subr.mxu0 0.0
    %903 = vmatpush1.msra.mxu0 0.0
    %904 = vmatprep.subr.mxu0 0.0
    %905 = vmatpush1.msra.mxu0 0.0
    %906 = vmatprep.mubr.f32.mxu0 0.0
    %907 = vmatmul.mubr.f32.gmra.mrb[0].mxu0 %v840
    %v908 = vpop.f32.mrb[0].mxu0
    %v909 = vadd.f32 %v838, %v908
    %v910 = vpop.f32.mrb[0].mxu0
    %911 = vdwg.mxu0
    %vm912 = vcmask 254976
    %v913 = vsel %vm912, %v909, 0.0
    %914 = vadd.xlane.f32.xlu0 %v913
    %v915 = vpop.xlane.xlu0 %914
    %v916 = vmul.f32 %v915, %v644
    %v917 = vsub.f32 %v909, %v916
    %v918 = vmul.f32 %v917, %v917
    %v919 = vsel %vm912, %v918, 0.0
    %920 = vadd.xlane.f32.xlu0 %v919
    %v921 = vpop.xlane.xlu0 %920
    %v922 = vmul.f32 %v921, %v644
    %v923 = vadd.f32 %v922, 1e-05
    %v924 = vrsqrt.pop %v923
    %v925 = vmul.f32 %v917, %v924
    %v926 = vmul.f32 %v925, %v747
    %927 = vrot.lane.b32.xlu0 %v747, 96
    %v928 = vpop.permute.xlu0 %927
    %v930 = vadd.f32 %v926, %v928
    %931 = vst.msk [vmem:[#allocation5] sm:$0x3] %vm912, %v930
    // Predicated region
    $region18: #{hier_attn_pool.1} parent=1 // pred_check
      _
    $region19: #{hier_attn_pool.1} parent=1 // pred_check_branch
      %933 = sbr.rel (0) target = $region21
    $region20: #{hier_attn_pool.1} parent=1 // pred_region
      %s935 = ssub.s32 32, 32
      %936 = vsyncadd [#allocation4], %s935
      %s938 = sshll.u32 [#allocation5], 4
      %s939 = int_to_ptr.vmem [resolvable:$true] %s938
      %941 = dma.vmem_to_hbm [thread:$0]  %s939, 32, %s3, [#allocation4]
    $region21: #{hier_attn_pool.1} parent=1 // pred_fallthru
      _
    // Predicated region
    $region22: #{hier_attn_pool.1} parent=1 // pred_check
      _
    $region23: #{hier_attn_pool.1} parent=1 // pred_check_branch
      %943 = sbr.rel (0) target = $region25
    $region24: #{hier_attn_pool.1} parent=1 // pred_region
      %944 = dma.done [#allocation4], 32
    $region25: #{hier_attn_pool.1} parent=1 // pred_fallthru
      _
    %945 = vsyncpa [#allocation3], 1
    %946 = vsyncpa [#allocation4], 1

</llo_original>
